<compile_context>
chip_gen: v6e
topology: v6e:2x2x1
jax: 0.10.0
libtpu: 0.0.40
codegen_flags: <defaults>
</compile_context>

<pallas_src>
import functools

import jax
import jax.numpy as jnp
from jax.experimental import pallas as pl
from jax.experimental.pallas import tpu as pltpu


# -----------------------------------------------------------------------------
# Fused Pallas kernel: encoder -> decoder -> fused reconstruction head
# -----------------------------------------------------------------------------
def _fused_autoencoder_kernel(x_ref, *refs):
    """refs = [w0, b0, g0, be0, ..., w5, b5, g5, be5, head_w, head_b, o_ref].

    Each dense_reg layer: Linear -> LeakyReLU(0.01) -> BatchNorm1d (train-mode,
    full-batch biased stats, eps=1e-5).  Dropout(p=0.0) omitted (identity).
    Head: single fused Linear producing the concatenated reconstruction slab.
    """
    *layer_refs, head_w_ref, head_b_ref, o_ref = refs
    n_layers = len(layer_refs) // 4

    h = x_ref[...]                                                    # (B, 29)
    for i in range(n_layers):
        w = layer_refs[4 * i][...]
        b = layer_refs[4 * i + 1][...]
        gamma = layer_refs[4 * i + 2][...]
        beta = layer_refs[4 * i + 3][...]

        y = jnp.dot(h, w, preferred_element_type=jnp.float32) + b    # (B, out)
        # LeakyReLU, negative_slope = 0.01 (torch default)
        y = jnp.where(y > 0, y, 0.01 * y)
        # BatchNorm1d train mode, folded into per-feature scale/shift.
        mean = jnp.mean(y, axis=0, keepdims=True)                    # (1, out)
        centered = y - mean
        var = jnp.mean(centered * centered, axis=0, keepdims=True)   # (1, out)
        scale = jax.lax.rsqrt(var + 1e-5) * gamma
        shift = beta - mean * scale
        h = y * scale + shift

    # Fused reconstruction heads: one lane-contiguous matmul.
    o_ref[...] = (
        jnp.dot(h, head_w_ref[...], preferred_element_type=jnp.float32)
        + head_b_ref[...]
    )


_VMEM = pl.BlockSpec(memory_space=pltpu.MemorySpace.VMEM)


def fused_autoencoder(embedded, layer_args, head_w, head_b):
    """Single pallas_call over the whole batch (no grid: BN needs global stats)."""
    B = embedded.shape[0]
    out_dim = head_w.shape[1]
    n_inputs = 1 + len(layer_args) + 2
    return pl.pallas_call(
        _fused_autoencoder_kernel,
        out_shape=jax.ShapeDtypeStruct((B, out_dim), jnp.float32),
        in_specs=[_VMEM] * n_inputs,
        out_specs=_VMEM,
    )(embedded, *layer_args, head_w, head_b)


# -----------------------------------------------------------------------------
# Model definition (mirrors AutoEncoder.create_model for a concrete build_params)
# -----------------------------------------------------------------------------
BUILD_PARAMS = {
    "features": {
        "embedding": {
            "diag": {"num_classes": 32, "dimensions": 8, "feature_idx": [0, 1, 2]},
        },
        "one_hots": {
            "sex": {"num_classes": 4, "feature_idx": 3},
        },
        "continuous": {
            "age": {"feature_idx": 4},
        },
    },
    "encoding": {"total_layers": 2, "dimensions": 32},
    "latent": {"dimensions": 16},
}

# dense_encoding_input_dim = 3*8 (embedding) + 4 (one-hot) + 1 (continuous) = 29
DENSE_INPUT_DIM = (
    BUILD_PARAMS["features"]["embedding"]["diag"]["dimensions"]
    * len(BUILD_PARAMS["features"]["embedding"]["diag"]["feature_idx"])
    + BUILD_PARAMS["features"]["one_hots"]["sex"]["num_classes"]
    + 1
)


def _init_linear(key, in_dim, out_dim):
    """Deterministic torch-like init: U(-1/sqrt(fan_in), 1/sqrt(fan_in))."""
    kw, kb = jax.random.split(key)
    bound = 1.0 / (in_dim ** 0.5)
    w = jax.random.uniform(kw, (in_dim, out_dim), jnp.float32, -bound, bound)
    b = jax.random.uniform(kb, (1, out_dim), jnp.float32, -bound, bound)
    return {"w": w, "b": b}


def _init_dense_reg(key, in_dim, out_dim):
    p = _init_linear(key, in_dim, out_dim)
    p["gamma"] = jnp.ones((1, out_dim), jnp.float32)
    p["beta"] = jnp.zeros((1, out_dim), jnp.float32)
    return p


def init_params(key):
    keys = jax.random.split(key, 16)
    enc_dim = BUILD_PARAMS["encoding"]["dimensions"]
    lat_dim = BUILD_PARAMS["latent"]["dimensions"]
    emb = BUILD_PARAMS["features"]["embedding"]["diag"]

    params = {
        "embeddings": {
            "diag": jax.random.normal(
                keys[0], (emb["num_classes"], emb["dimensions"]), jnp.float32
            )
        },
        "encoder": [
            _init_dense_reg(keys[1], DENSE_INPUT_DIM, enc_dim),
            _init_dense_reg(keys[2], enc_dim, enc_dim),
            _init_dense_reg(keys[3], enc_dim, lat_dim),          # latent layer
        ],
        "decoder": [
            _init_dense_reg(keys[4], lat_dim, enc_dim),
            _init_dense_reg(keys[5], enc_dim, enc_dim),
            _init_dense_reg(keys[6], enc_dim, DENSE_INPUT_DIM),  # deembedding
        ],
        "reconstruction": {
            "diag": _init_linear(keys[7], DENSE_INPUT_DIM, emb["num_classes"]),
            "sex": _init_linear(
                keys[8],
                DENSE_INPUT_DIM,
                BUILD_PARAMS["features"]["one_hots"]["sex"]["num_classes"],
            ),
            "age": _init_linear(keys[9], DENSE_INPUT_DIM, 1),
        },
    }
    return params


# Reconstruction head layout inside the fused (29, 37) weight.
_HEAD_ORDER = ("diag", "sex", "age")
_HEAD_WIDTHS = {
    "diag": BUILD_PARAMS["features"]["embedding"]["diag"]["num_classes"],   # 32
    "sex": BUILD_PARAMS["features"]["one_hots"]["sex"]["num_classes"],      # 4
    "age": 1,
}


# -----------------------------------------------------------------------------
# Forward pass (matches AutoEncoder.forward semantics, training mode)
# -----------------------------------------------------------------------------
def embed(params, x):
    """Glue: embedding gather, one-hot expansion, concatenation, ground truth."""
    feats = BUILD_PARAMS["features"]
    pre_encoding = []
    ground_truth = {}

    # embedding features
    emb_info = feats["embedding"]["diag"]
    idx = jnp.asarray(emb_info["feature_idx"], jnp.int32)
    batch_emb = x[:, idx].astype(jnp.int32)                           # (B, 3)
    table = params["embeddings"]["diag"]                              # (32, 8)
    embedded = jnp.take(table, batch_emb, axis=0)                     # (B, 3, 8)
    embedded = embedded.reshape(x.shape[0], -1)                       # (B, 24)
    oh = jax.nn.one_hot(batch_emb, emb_info["num_classes"], dtype=jnp.float32)
    ground_truth["diag"] = (jnp.sum(oh, axis=1) > 0).astype(jnp.float32)  # (B, 32)
    pre_encoding.append(embedded)

    # one-hot features
    oh_info = feats["one_hots"]["sex"]
    sex_idx = x[:, oh_info["feature_idx"]].astype(jnp.int32)
    sex_oh = jax.nn.one_hot(sex_idx, oh_info["num_classes"], dtype=jnp.float32)
    pre_encoding.append(sex_oh)
    ground_truth["sex"] = sex_oh

    # continuous features
    cont = x[:, feats["continuous"]["age"]["feature_idx"]].reshape(-1, 1)
    pre_encoding.append(cont.astype(jnp.float32))
    ground_truth["age"] = cont.astype(jnp.float32)

    return jnp.concatenate(pre_encoding, axis=1), ground_truth        # (B, 29)


def forward(params, x):
    embedded, ground_truth = embed(params, x)

    # Flatten dense_reg params in execution order (encoder then decoder).
    layer_args = []
    for lp in params["encoder"] + params["decoder"]:
        layer_args += [lp["w"], lp["b"], lp["gamma"], lp["beta"]]

    # Fuse the three reconstruction heads into one (29, 37) weight + (1, 37) bias.
    # (params are compile-time constants under jit-of-partial -> folded once.)
    head_w = jnp.concatenate(
        [params["reconstruction"][n]["w"] for n in _HEAD_ORDER], axis=1
    )
    head_b = jnp.concatenate(
        [params["reconstruction"][n]["b"] for n in _HEAD_ORDER], axis=1
    )

    out = fused_autoencoder(embedded, layer_args, head_w, head_b)     # (B, 37)

    # Slice the fused head output back into the per-feature reconstructions.
    reconstruction = {}
    off = 0
    for name in _HEAD_ORDER:
        w = _HEAD_WIDTHS[name]
        reconstruction[name] = out[:, off:off + w]
        off += w

    # TODO(synk): BatchNorm1d running_mean/running_var are not tracked/updated
    # (forward output matches torch training-mode normalization regardless).
    return reconstruction, ground_truth


# -----------------------------------------------------------------------------
if __name__ == "__main__":
    key = jax.random.PRNGKey(0)
    k_param, k_diag, k_sex, k_age = jax.random.split(key, 4)

    params = init_params(k_param)

    B = 8
    # x columns: [diag0, diag1, diag2, sex, age]  (mixed-type columns as float32,
    # matching the torch module which casts categorical columns to long)
    diag_cols = jax.random.randint(k_diag, (B, 3), 0, 32).astype(jnp.float32)
    sex_col = jax.random.randint(k_sex, (B, 1), 0, 4).astype(jnp.float32)
    age_col = jax.random.uniform(k_age, (B, 1), jnp.float32, 0.0, 1.0)
    x = jnp.concatenate([diag_cols, sex_col, age_col], axis=1)        # (8, 5)

    fwd = jax.jit(functools.partial(forward, params))
    recons, targets = fwd(x)
    jax.block_until_ready(recons)
    jax.block_until_ready(targets)

    # sanity: shapes must match torch semantics
    assert recons["diag"].shape == (B, 32)
    assert recons["sex"].shape == (B, 4)
    assert recons["age"].shape == (B, 1)
    assert targets["diag"].shape == (B, 32)
    assert targets["sex"].shape == (B, 4)
    assert targets["age"].shape == (B, 1)
    assert all(jnp.all(jnp.isfinite(v)) for v in recons.values())

    print("KERNEL_OK")
</pallas_src>

<mosaic_0001>
module attributes {stable_mosaic.version = 11 : i64} {
  func.func @_fused_autoencoder_kernel(%arg0: memref<8x29xf32, #tpu.memory_space<vmem>>, %arg1: memref<29x32xf32, #tpu.memory_space<vmem>>, %arg2: memref<1x32xf32, #tpu.memory_space<vmem>>, %arg3: memref<1x32xf32, #tpu.memory_space<vmem>>, %arg4: memref<1x32xf32, #tpu.memory_space<vmem>>, %arg5: memref<32x32xf32, #tpu.memory_space<vmem>>, %arg6: memref<1x32xf32, #tpu.memory_space<vmem>>, %arg7: memref<1x32xf32, #tpu.memory_space<vmem>>, %arg8: memref<1x32xf32, #tpu.memory_space<vmem>>, %arg9: memref<32x16xf32, #tpu.memory_space<vmem>>, %arg10: memref<1x16xf32, #tpu.memory_space<vmem>>, %arg11: memref<1x16xf32, #tpu.memory_space<vmem>>, %arg12: memref<1x16xf32, #tpu.memory_space<vmem>>, %arg13: memref<16x32xf32, #tpu.memory_space<vmem>>, %arg14: memref<1x32xf32, #tpu.memory_space<vmem>>, %arg15: memref<1x32xf32, #tpu.memory_space<vmem>>, %arg16: memref<1x32xf32, #tpu.memory_space<vmem>>, %arg17: memref<32x32xf32, #tpu.memory_space<vmem>>, %arg18: memref<1x32xf32, #tpu.memory_space<vmem>>, %arg19: memref<1x32xf32, #tpu.memory_space<vmem>>, %arg20: memref<1x32xf32, #tpu.memory_space<vmem>>, %arg21: memref<32x29xf32, #tpu.memory_space<vmem>>, %arg22: memref<1x29xf32, #tpu.memory_space<vmem>>, %arg23: memref<1x29xf32, #tpu.memory_space<vmem>>, %arg24: memref<1x29xf32, #tpu.memory_space<vmem>>, %arg25: memref<29x37xf32, #tpu.memory_space<vmem>>, %arg26: memref<1x37xf32, #tpu.memory_space<vmem>>, %arg27: memref<8x37xf32, #tpu.memory_space<vmem>>) attributes {dimension_semantics = [], scalar_prefetch = 0 : i64, scratch_operands = 0 : i64, tpu.core_type = #tpu.core_type<tc>} {
    %c0 = arith.constant 0 : index
    %c0_0 = arith.constant 0 : index
    %0 = vector.load %arg0[%c0, %c0_0] : memref<8x29xf32, #tpu.memory_space<vmem>>, vector<8x29xf32>
    %c0_1 = arith.constant 0 : index
    %c0_2 = arith.constant 0 : index
    %1 = vector.load %arg1[%c0_1, %c0_2] : memref<29x32xf32, #tpu.memory_space<vmem>>, vector<29x32xf32>
    %c0_3 = arith.constant 0 : index
    %c0_4 = arith.constant 0 : index
    %2 = vector.load %arg2[%c0_3, %c0_4] : memref<1x32xf32, #tpu.memory_space<vmem>>, vector<1x32xf32>
    %c0_5 = arith.constant 0 : index
    %c0_6 = arith.constant 0 : index
    %3 = vector.load %arg3[%c0_5, %c0_6] : memref<1x32xf32, #tpu.memory_space<vmem>>, vector<1x32xf32>
    %c0_7 = arith.constant 0 : index
    %c0_8 = arith.constant 0 : index
    %4 = vector.load %arg4[%c0_7, %c0_8] : memref<1x32xf32, #tpu.memory_space<vmem>>, vector<1x32xf32>
    %cst = arith.constant dense<0.000000e+00> : vector<8x32xf32>
    %5 = tpu.matmul %0, %1, %cst {dimension_numbers = #tpu.dot_dimension_numbers<[1], [0], [0], [1], [0, 0, 1, 1], [], []>} : vector<8x29xf32>, vector<29x32xf32>, vector<8x32xf32> -> vector<8x32xf32>
    %6 = vector.broadcast %2 : vector<1x32xf32> to vector<8x32xf32>
    %7 = arith.addf %5, %6 : vector<8x32xf32>
    %cst_9 = arith.constant 0.000000e+00 : f32
    %8 = vector.broadcast %cst_9 : f32 to vector<8x32xf32>
    %9 = arith.cmpf ogt, %7, %8 : vector<8x32xf32>
    %cst_10 = arith.constant 0.00999999977 : f32
    %10 = vector.broadcast %cst_10 : f32 to vector<8x32xf32>
    %11 = arith.mulf %10, %7 : vector<8x32xf32>
    %12 = arith.select %9, %7, %11 : vector<8x32xi1>, vector<8x32xf32>
    %cst_11 = arith.constant dense<0.000000e+00> : vector<32xf32>
    %13 = vector.multi_reduction <add>, %12, %cst_11 [0] : vector<8x32xf32> to vector<32xf32>
    %14 = vector.shape_cast %13 : vector<32xf32> to vector<1x32xf32>
    %cst_12 = arith.constant 8.000000e+00 : f32
    %15 = vector.broadcast %cst_12 : f32 to vector<1x32xf32>
    %16 = arith.divf %14, %15 : vector<1x32xf32>
    %17 = vector.broadcast %16 : vector<1x32xf32> to vector<8x32xf32>
    %18 = arith.subf %12, %17 : vector<8x32xf32>
    %19 = arith.mulf %18, %18 : vector<8x32xf32>
    %cst_13 = arith.constant dense<0.000000e+00> : vector<32xf32>
    %20 = vector.multi_reduction <add>, %19, %cst_13 [0] : vector<8x32xf32> to vector<32xf32>
    %21 = vector.shape_cast %20 : vector<32xf32> to vector<1x32xf32>
    %cst_14 = arith.constant 8.000000e+00 : f32
    %22 = vector.broadcast %cst_14 : f32 to vector<1x32xf32>
    %23 = arith.divf %21, %22 : vector<1x32xf32>
    %cst_15 = arith.constant 9.99999974E-6 : f32
    %24 = vector.broadcast %cst_15 : f32 to vector<1x32xf32>
    %25 = arith.addf %23, %24 : vector<1x32xf32>
    %26 = math.rsqrt %25 : vector<1x32xf32>
    %27 = arith.mulf %26, %3 : vector<1x32xf32>
    %28 = arith.mulf %16, %27 : vector<1x32xf32>
    %29 = arith.subf %4, %28 : vector<1x32xf32>
    %30 = vector.broadcast %27 : vector<1x32xf32> to vector<8x32xf32>
    %31 = arith.mulf %12, %30 : vector<8x32xf32>
    %32 = vector.broadcast %29 : vector<1x32xf32> to vector<8x32xf32>
    %33 = arith.addf %31, %32 : vector<8x32xf32>
    %c0_16 = arith.constant 0 : index
    %c0_17 = arith.constant 0 : index
    %34 = vector.load %arg5[%c0_16, %c0_17] : memref<32x32xf32, #tpu.memory_space<vmem>>, vector<32x32xf32>
    %c0_18 = arith.constant 0 : index
    %c0_19 = arith.constant 0 : index
    %35 = vector.load %arg6[%c0_18, %c0_19] : memref<1x32xf32, #tpu.memory_space<vmem>>, vector<1x32xf32>
    %c0_20 = arith.constant 0 : index
    %c0_21 = arith.constant 0 : index
    %36 = vector.load %arg7[%c0_20, %c0_21] : memref<1x32xf32, #tpu.memory_space<vmem>>, vector<1x32xf32>
    %c0_22 = arith.constant 0 : index
    %c0_23 = arith.constant 0 : index
    %37 = vector.load %arg8[%c0_22, %c0_23] : memref<1x32xf32, #tpu.memory_space<vmem>>, vector<1x32xf32>
    %cst_24 = arith.constant dense<0.000000e+00> : vector<8x32xf32>
    %38 = tpu.matmul %33, %34, %cst_24 {dimension_numbers = #tpu.dot_dimension_numbers<[1], [0], [0], [1], [0, 0, 1, 1], [], []>} : vector<8x32xf32>, vector<32x32xf32>, vector<8x32xf32> -> vector<8x32xf32>
    %39 = vector.broadcast %35 : vector<1x32xf32> to vector<8x32xf32>
    %40 = arith.addf %38, %39 : vector<8x32xf32>
    %cst_25 = arith.constant 0.000000e+00 : f32
    %41 = vector.broadcast %cst_25 : f32 to vector<8x32xf32>
    %42 = arith.cmpf ogt, %40, %41 : vector<8x32xf32>
    %cst_26 = arith.constant 0.00999999977 : f32
    %43 = vector.broadcast %cst_26 : f32 to vector<8x32xf32>
    %44 = arith.mulf %43, %40 : vector<8x32xf32>
    %45 = arith.select %42, %40, %44 : vector<8x32xi1>, vector<8x32xf32>
    %cst_27 = arith.constant dense<0.000000e+00> : vector<32xf32>
    %46 = vector.multi_reduction <add>, %45, %cst_27 [0] : vector<8x32xf32> to vector<32xf32>
    %47 = vector.shape_cast %46 : vector<32xf32> to vector<1x32xf32>
    %cst_28 = arith.constant 8.000000e+00 : f32
    %48 = vector.broadcast %cst_28 : f32 to vector<1x32xf32>
    %49 = arith.divf %47, %48 : vector<1x32xf32>
    %50 = vector.broadcast %49 : vector<1x32xf32> to vector<8x32xf32>
    %51 = arith.subf %45, %50 : vector<8x32xf32>
    %52 = arith.mulf %51, %51 : vector<8x32xf32>
    %cst_29 = arith.constant dense<0.000000e+00> : vector<32xf32>
    %53 = vector.multi_reduction <add>, %52, %cst_29 [0] : vector<8x32xf32> to vector<32xf32>
    %54 = vector.shape_cast %53 : vector<32xf32> to vector<1x32xf32>
    %cst_30 = arith.constant 8.000000e+00 : f32
    %55 = vector.broadcast %cst_30 : f32 to vector<1x32xf32>
    %56 = arith.divf %54, %55 : vector<1x32xf32>
    %cst_31 = arith.constant 9.99999974E-6 : f32
    %57 = vector.broadcast %cst_31 : f32 to vector<1x32xf32>
    %58 = arith.addf %56, %57 : vector<1x32xf32>
    %59 = math.rsqrt %58 : vector<1x32xf32>
    %60 = arith.mulf %59, %36 : vector<1x32xf32>
    %61 = arith.mulf %49, %60 : vector<1x32xf32>
    %62 = arith.subf %37, %61 : vector<1x32xf32>
    %63 = vector.broadcast %60 : vector<1x32xf32> to vector<8x32xf32>
    %64 = arith.mulf %45, %63 : vector<8x32xf32>
    %65 = vector.broadcast %62 : vector<1x32xf32> to vector<8x32xf32>
    %66 = arith.addf %64, %65 : vector<8x32xf32>
    %c0_32 = arith.constant 0 : index
    %c0_33 = arith.constant 0 : index
    %67 = vector.load %arg9[%c0_32, %c0_33] : memref<32x16xf32, #tpu.memory_space<vmem>>, vector<32x16xf32>
    %c0_34 = arith.constant 0 : index
    %c0_35 = arith.constant 0 : index
    %68 = vector.load %arg10[%c0_34, %c0_35] : memref<1x16xf32, #tpu.memory_space<vmem>>, vector<1x16xf32>
    %c0_36 = arith.constant 0 : index
    %c0_37 = arith.constant 0 : index
    %69 = vector.load %arg11[%c0_36, %c0_37] : memref<1x16xf32, #tpu.memory_space<vmem>>, vector<1x16xf32>
    %c0_38 = arith.constant 0 : index
    %c0_39 = arith.constant 0 : index
    %70 = vector.load %arg12[%c0_38, %c0_39] : memref<1x16xf32, #tpu.memory_space<vmem>>, vector<1x16xf32>
    %cst_40 = arith.constant dense<0.000000e+00> : vector<8x16xf32>
    %71 = tpu.matmul %66, %67, %cst_40 {dimension_numbers = #tpu.dot_dimension_numbers<[1], [0], [0], [1], [0, 0, 1, 1], [], []>} : vector<8x32xf32>, vector<32x16xf32>, vector<8x16xf32> -> vector<8x16xf32>
    %72 = vector.broadcast %68 : vector<1x16xf32> to vector<8x16xf32>
    %73 = arith.addf %71, %72 : vector<8x16xf32>
    %cst_41 = arith.constant 0.000000e+00 : f32
    %74 = vector.broadcast %cst_41 : f32 to vector<8x16xf32>
    %75 = arith.cmpf ogt, %73, %74 : vector<8x16xf32>
    %cst_42 = arith.constant 0.00999999977 : f32
    %76 = vector.broadcast %cst_42 : f32 to vector<8x16xf32>
    %77 = arith.mulf %76, %73 : vector<8x16xf32>
    %78 = arith.select %75, %73, %77 : vector<8x16xi1>, vector<8x16xf32>
    %cst_43 = arith.constant dense<0.000000e+00> : vector<16xf32>
    %79 = vector.multi_reduction <add>, %78, %cst_43 [0] : vector<8x16xf32> to vector<16xf32>
    %80 = vector.shape_cast %79 : vector<16xf32> to vector<1x16xf32>
    %cst_44 = arith.constant 8.000000e+00 : f32
    %81 = vector.broadcast %cst_44 : f32 to vector<1x16xf32>
    %82 = arith.divf %80, %81 : vector<1x16xf32>
    %83 = vector.broadcast %82 : vector<1x16xf32> to vector<8x16xf32>
    %84 = arith.subf %78, %83 : vector<8x16xf32>
    %85 = arith.mulf %84, %84 : vector<8x16xf32>
    %cst_45 = arith.constant dense<0.000000e+00> : vector<16xf32>
    %86 = vector.multi_reduction <add>, %85, %cst_45 [0] : vector<8x16xf32> to vector<16xf32>
    %87 = vector.shape_cast %86 : vector<16xf32> to vector<1x16xf32>
    %cst_46 = arith.constant 8.000000e+00 : f32
    %88 = vector.broadcast %cst_46 : f32 to vector<1x16xf32>
    %89 = arith.divf %87, %88 : vector<1x16xf32>
    %cst_47 = arith.constant 9.99999974E-6 : f32
    %90 = vector.broadcast %cst_47 : f32 to vector<1x16xf32>
    %91 = arith.addf %89, %90 : vector<1x16xf32>
    %92 = math.rsqrt %91 : vector<1x16xf32>
    %93 = arith.mulf %92, %69 : vector<1x16xf32>
    %94 = arith.mulf %82, %93 : vector<1x16xf32>
    %95 = arith.subf %70, %94 : vector<1x16xf32>
    %96 = vector.broadcast %93 : vector<1x16xf32> to vector<8x16xf32>
    %97 = arith.mulf %78, %96 : vector<8x16xf32>
    %98 = vector.broadcast %95 : vector<1x16xf32> to vector<8x16xf32>
    %99 = arith.addf %97, %98 : vector<8x16xf32>
    %c0_48 = arith.constant 0 : index
    %c0_49 = arith.constant 0 : index
    %100 = vector.load %arg13[%c0_48, %c0_49] : memref<16x32xf32, #tpu.memory_space<vmem>>, vector<16x32xf32>
    %c0_50 = arith.constant 0 : index
    %c0_51 = arith.constant 0 : index
    %101 = vector.load %arg14[%c0_50, %c0_51] : memref<1x32xf32, #tpu.memory_space<vmem>>, vector<1x32xf32>
    %c0_52 = arith.constant 0 : index
    %c0_53 = arith.constant 0 : index
    %102 = vector.load %arg15[%c0_52, %c0_53] : memref<1x32xf32, #tpu.memory_space<vmem>>, vector<1x32xf32>
    %c0_54 = arith.constant 0 : index
    %c0_55 = arith.constant 0 : index
    %103 = vector.load %arg16[%c0_54, %c0_55] : memref<1x32xf32, #tpu.memory_space<vmem>>, vector<1x32xf32>
    %cst_56 = arith.constant dense<0.000000e+00> : vector<8x32xf32>
    %104 = tpu.matmul %99, %100, %cst_56 {dimension_numbers = #tpu.dot_dimension_numbers<[1], [0], [0], [1], [0, 0, 1, 1], [], []>} : vector<8x16xf32>, vector<16x32xf32>, vector<8x32xf32> -> vector<8x32xf32>
    %105 = vector.broadcast %101 : vector<1x32xf32> to vector<8x32xf32>
    %106 = arith.addf %104, %105 : vector<8x32xf32>
    %cst_57 = arith.constant 0.000000e+00 : f32
    %107 = vector.broadcast %cst_57 : f32 to vector<8x32xf32>
    %108 = arith.cmpf ogt, %106, %107 : vector<8x32xf32>
    %cst_58 = arith.constant 0.00999999977 : f32
    %109 = vector.broadcast %cst_58 : f32 to vector<8x32xf32>
    %110 = arith.mulf %109, %106 : vector<8x32xf32>
    %111 = arith.select %108, %106, %110 : vector<8x32xi1>, vector<8x32xf32>
    %cst_59 = arith.constant dense<0.000000e+00> : vector<32xf32>
    %112 = vector.multi_reduction <add>, %111, %cst_59 [0] : vector<8x32xf32> to vector<32xf32>
    %113 = vector.shape_cast %112 : vector<32xf32> to vector<1x32xf32>
    %cst_60 = arith.constant 8.000000e+00 : f32
    %114 = vector.broadcast %cst_60 : f32 to vector<1x32xf32>
    %115 = arith.divf %113, %114 : vector<1x32xf32>
    %116 = vector.broadcast %115 : vector<1x32xf32> to vector<8x32xf32>
    %117 = arith.subf %111, %116 : vector<8x32xf32>
    %118 = arith.mulf %117, %117 : vector<8x32xf32>
    %cst_61 = arith.constant dense<0.000000e+00> : vector<32xf32>
    %119 = vector.multi_reduction <add>, %118, %cst_61 [0] : vector<8x32xf32> to vector<32xf32>
    %120 = vector.shape_cast %119 : vector<32xf32> to vector<1x32xf32>
    %cst_62 = arith.constant 8.000000e+00 : f32
    %121 = vector.broadcast %cst_62 : f32 to vector<1x32xf32>
    %122 = arith.divf %120, %121 : vector<1x32xf32>
    %cst_63 = arith.constant 9.99999974E-6 : f32
    %123 = vector.broadcast %cst_63 : f32 to vector<1x32xf32>
    %124 = arith.addf %122, %123 : vector<1x32xf32>
    %125 = math.rsqrt %124 : vector<1x32xf32>
    %126 = arith.mulf %125, %102 : vector<1x32xf32>
    %127 = arith.mulf %115, %126 : vector<1x32xf32>
    %128 = arith.subf %103, %127 : vector<1x32xf32>
    %129 = vector.broadcast %126 : vector<1x32xf32> to vector<8x32xf32>
    %130 = arith.mulf %111, %129 : vector<8x32xf32>
    %131 = vector.broadcast %128 : vector<1x32xf32> to vector<8x32xf32>
    %132 = arith.addf %130, %131 : vector<8x32xf32>
    %c0_64 = arith.constant 0 : index
    %c0_65 = arith.constant 0 : index
    %133 = vector.load %arg17[%c0_64, %c0_65] : memref<32x32xf32, #tpu.memory_space<vmem>>, vector<32x32xf32>
    %c0_66 = arith.constant 0 : index
    %c0_67 = arith.constant 0 : index
    %134 = vector.load %arg18[%c0_66, %c0_67] : memref<1x32xf32, #tpu.memory_space<vmem>>, vector<1x32xf32>
    %c0_68 = arith.constant 0 : index
    %c0_69 = arith.constant 0 : index
    %135 = vector.load %arg19[%c0_68, %c0_69] : memref<1x32xf32, #tpu.memory_space<vmem>>, vector<1x32xf32>
    %c0_70 = arith.constant 0 : index
    %c0_71 = arith.constant 0 : index
    %136 = vector.load %arg20[%c0_70, %c0_71] : memref<1x32xf32, #tpu.memory_space<vmem>>, vector<1x32xf32>
    %cst_72 = arith.constant dense<0.000000e+00> : vector<8x32xf32>
    %137 = tpu.matmul %132, %133, %cst_72 {dimension_numbers = #tpu.dot_dimension_numbers<[1], [0], [0], [1], [0, 0, 1, 1], [], []>} : vector<8x32xf32>, vector<32x32xf32>, vector<8x32xf32> -> vector<8x32xf32>
    %138 = vector.broadcast %134 : vector<1x32xf32> to vector<8x32xf32>
    %139 = arith.addf %137, %138 : vector<8x32xf32>
    %cst_73 = arith.constant 0.000000e+00 : f32
    %140 = vector.broadcast %cst_73 : f32 to vector<8x32xf32>
    %141 = arith.cmpf ogt, %139, %140 : vector<8x32xf32>
    %cst_74 = arith.constant 0.00999999977 : f32
    %142 = vector.broadcast %cst_74 : f32 to vector<8x32xf32>
    %143 = arith.mulf %142, %139 : vector<8x32xf32>
    %144 = arith.select %141, %139, %143 : vector<8x32xi1>, vector<8x32xf32>
    %cst_75 = arith.constant dense<0.000000e+00> : vector<32xf32>
    %145 = vector.multi_reduction <add>, %144, %cst_75 [0] : vector<8x32xf32> to vector<32xf32>
    %146 = vector.shape_cast %145 : vector<32xf32> to vector<1x32xf32>
    %cst_76 = arith.constant 8.000000e+00 : f32
    %147 = vector.broadcast %cst_76 : f32 to vector<1x32xf32>
    %148 = arith.divf %146, %147 : vector<1x32xf32>
    %149 = vector.broadcast %148 : vector<1x32xf32> to vector<8x32xf32>
    %150 = arith.subf %144, %149 : vector<8x32xf32>
    %151 = arith.mulf %150, %150 : vector<8x32xf32>
    %cst_77 = arith.constant dense<0.000000e+00> : vector<32xf32>
    %152 = vector.multi_reduction <add>, %151, %cst_77 [0] : vector<8x32xf32> to vector<32xf32>
    %153 = vector.shape_cast %152 : vector<32xf32> to vector<1x32xf32>
    %cst_78 = arith.constant 8.000000e+00 : f32
    %154 = vector.broadcast %cst_78 : f32 to vector<1x32xf32>
    %155 = arith.divf %153, %154 : vector<1x32xf32>
    %cst_79 = arith.constant 9.99999974E-6 : f32
    %156 = vector.broadcast %cst_79 : f32 to vector<1x32xf32>
    %157 = arith.addf %155, %156 : vector<1x32xf32>
    %158 = math.rsqrt %157 : vector<1x32xf32>
    %159 = arith.mulf %158, %135 : vector<1x32xf32>
    %160 = arith.mulf %148, %159 : vector<1x32xf32>
    %161 = arith.subf %136, %160 : vector<1x32xf32>
    %162 = vector.broadcast %159 : vector<1x32xf32> to vector<8x32xf32>
    %163 = arith.mulf %144, %162 : vector<8x32xf32>
    %164 = vector.broadcast %161 : vector<1x32xf32> to vector<8x32xf32>
    %165 = arith.addf %163, %164 : vector<8x32xf32>
    %c0_80 = arith.constant 0 : index
    %c0_81 = arith.constant 0 : index
    %166 = vector.load %arg21[%c0_80, %c0_81] : memref<32x29xf32, #tpu.memory_space<vmem>>, vector<32x29xf32>
    %c0_82 = arith.constant 0 : index
    %c0_83 = arith.constant 0 : index
    %167 = vector.load %arg22[%c0_82, %c0_83] : memref<1x29xf32, #tpu.memory_space<vmem>>, vector<1x29xf32>
    %c0_84 = arith.constant 0 : index
    %c0_85 = arith.constant 0 : index
    %168 = vector.load %arg23[%c0_84, %c0_85] : memref<1x29xf32, #tpu.memory_space<vmem>>, vector<1x29xf32>
    %c0_86 = arith.constant 0 : index
    %c0_87 = arith.constant 0 : index
    %169 = vector.load %arg24[%c0_86, %c0_87] : memref<1x29xf32, #tpu.memory_space<vmem>>, vector<1x29xf32>
    %cst_88 = arith.constant dense<0.000000e+00> : vector<8x29xf32>
    %170 = tpu.matmul %165, %166, %cst_88 {dimension_numbers = #tpu.dot_dimension_numbers<[1], [0], [0], [1], [0, 0, 1, 1], [], []>} : vector<8x32xf32>, vector<32x29xf32>, vector<8x29xf32> -> vector<8x29xf32>
    %171 = vector.broadcast %167 : vector<1x29xf32> to vector<8x29xf32>
    %172 = arith.addf %170, %171 : vector<8x29xf32>
    %cst_89 = arith.constant 0.000000e+00 : f32
    %173 = vector.broadcast %cst_89 : f32 to vector<8x29xf32>
    %174 = arith.cmpf ogt, %172, %173 : vector<8x29xf32>
    %cst_90 = arith.constant 0.00999999977 : f32
    %175 = vector.broadcast %cst_90 : f32 to vector<8x29xf32>
    %176 = arith.mulf %175, %172 : vector<8x29xf32>
    %177 = arith.select %174, %172, %176 : vector<8x29xi1>, vector<8x29xf32>
    %cst_91 = arith.constant dense<0.000000e+00> : vector<29xf32>
    %178 = vector.multi_reduction <add>, %177, %cst_91 [0] : vector<8x29xf32> to vector<29xf32>
    %179 = vector.shape_cast %178 : vector<29xf32> to vector<1x29xf32>
    %cst_92 = arith.constant 8.000000e+00 : f32
    %180 = vector.broadcast %cst_92 : f32 to vector<1x29xf32>
    %181 = arith.divf %179, %180 : vector<1x29xf32>
    %182 = vector.broadcast %181 : vector<1x29xf32> to vector<8x29xf32>
    %183 = arith.subf %177, %182 : vector<8x29xf32>
    %184 = arith.mulf %183, %183 : vector<8x29xf32>
    %cst_93 = arith.constant dense<0.000000e+00> : vector<29xf32>
    %185 = vector.multi_reduction <add>, %184, %cst_93 [0] : vector<8x29xf32> to vector<29xf32>
    %186 = vector.shape_cast %185 : vector<29xf32> to vector<1x29xf32>
    %cst_94 = arith.constant 8.000000e+00 : f32
    %187 = vector.broadcast %cst_94 : f32 to vector<1x29xf32>
    %188 = arith.divf %186, %187 : vector<1x29xf32>
    %cst_95 = arith.constant 9.99999974E-6 : f32
    %189 = vector.broadcast %cst_95 : f32 to vector<1x29xf32>
    %190 = arith.addf %188, %189 : vector<1x29xf32>
    %191 = math.rsqrt %190 : vector<1x29xf32>
    %192 = arith.mulf %191, %168 : vector<1x29xf32>
    %193 = arith.mulf %181, %192 : vector<1x29xf32>
    %194 = arith.subf %169, %193 : vector<1x29xf32>
    %195 = vector.broadcast %192 : vector<1x29xf32> to vector<8x29xf32>
    %196 = arith.mulf %177, %195 : vector<8x29xf32>
    %197 = vector.broadcast %194 : vector<1x29xf32> to vector<8x29xf32>
    %198 = arith.addf %196, %197 : vector<8x29xf32>
    %c0_96 = arith.constant 0 : index
    %c0_97 = arith.constant 0 : index
    %199 = vector.load %arg25[%c0_96, %c0_97] : memref<29x37xf32, #tpu.memory_space<vmem>>, vector<29x37xf32>
    %cst_98 = arith.constant dense<0.000000e+00> : vector<8x37xf32>
    %200 = tpu.matmul %198, %199, %cst_98 {dimension_numbers = #tpu.dot_dimension_numbers<[1], [0], [0], [1], [0, 0, 1, 1], [], []>} : vector<8x29xf32>, vector<29x37xf32>, vector<8x37xf32> -> vector<8x37xf32>
    %c0_99 = arith.constant 0 : index
    %c0_100 = arith.constant 0 : index
    %201 = vector.load %arg26[%c0_99, %c0_100] : memref<1x37xf32, #tpu.memory_space<vmem>>, vector<1x37xf32>
    %202 = vector.broadcast %201 : vector<1x37xf32> to vector<8x37xf32>
    %203 = arith.addf %200, %202 : vector<8x37xf32>
    %c0_101 = arith.constant 0 : index
    %c0_102 = arith.constant 0 : index
    %204 = vector.load %arg27[%c0_101, %c0_102] : memref<8x37xf32, #tpu.memory_space<vmem>>, vector<8x37xf32>
    tpu.vector_store %arg27[%c0_101, %c0_102], %203 {strides = array<i32>} : memref<8x37xf32, #tpu.memory_space<vmem>>, vector<8x37xf32>,
    return
  }
}

</mosaic_0001>

<llo_original>
// kernel: forward.1
$region0: #{forward.1}
  #allocation0 [shape = 'u32[]', space=smem, size = 0x4, offset = 0x4, fixed_abs, tag = 'smem constant byte address 0x4 - core index']
  #allocation1 [shape = 'u32[144,128]{1,0:T(1,128)}', space=vmem, size = 0x12000, scoped, tag = 'internal scratch']
  %s0 = inlined_call_operand.vmem [shape: f32[8,29], index: 0, kind: input, shape index: {}]
  %s1 = inlined_call_operand.vmem [shape: f32[29,32], index: 1, kind: input, shape index: {}]
  %s2 = inlined_call_operand.vmem [shape: f32[1,32], index: 2, kind: input, shape index: {}]
  %s3 = inlined_call_operand.vmem [shape: f32[1,32], index: 3, kind: input, shape index: {}, may-alias: {3,7,15,19}]
  %s4 = inlined_call_operand.vmem [shape: f32[1,32], index: 4, kind: input, shape index: {}, may-alias: {4,8,16,20}]
  %s5 = inlined_call_operand.vmem [shape: f32[32,32], index: 5, kind: input, shape index: {}]
  %s6 = inlined_call_operand.vmem [shape: f32[1,32], index: 6, kind: input, shape index: {}]
  %s7 = inlined_call_operand.vmem [shape: f32[1,32], index: 7, kind: input, shape index: {}, may-alias: {3,7,15,19}]
  %s8 = inlined_call_operand.vmem [shape: f32[1,32], index: 8, kind: input, shape index: {}, may-alias: {4,8,16,20}]
  %s9 = inlined_call_operand.vmem [shape: f32[32,16], index: 9, kind: input, shape index: {}]
  %s10 = inlined_call_operand.vmem [shape: f32[1,16], index: 10, kind: input, shape index: {}]
  %s11 = inlined_call_operand.vmem [shape: f32[1,16], index: 11, kind: input, shape index: {}]
  %s12 = inlined_call_operand.vmem [shape: f32[1,16], index: 12, kind: input, shape index: {}]
  %s13 = inlined_call_operand.vmem [shape: f32[16,32], index: 13, kind: input, shape index: {}]
  %s14 = inlined_call_operand.vmem [shape: f32[1,32], index: 14, kind: input, shape index: {}]
  %s15 = inlined_call_operand.vmem [shape: f32[1,32], index: 15, kind: input, shape index: {}, may-alias: {3,7,15,19}]
  %s16 = inlined_call_operand.vmem [shape: f32[1,32], index: 16, kind: input, shape index: {}, may-alias: {4,8,16,20}]
  %s17 = inlined_call_operand.vmem [shape: f32[32,32], index: 17, kind: input, shape index: {}]
  %s18 = inlined_call_operand.vmem [shape: f32[1,32], index: 18, kind: input, shape index: {}]
  %s19 = inlined_call_operand.vmem [shape: f32[1,32], index: 19, kind: input, shape index: {}, may-alias: {3,7,15,19}]
  %s20 = inlined_call_operand.vmem [shape: f32[1,32], index: 20, kind: input, shape index: {}, may-alias: {4,8,16,20}]
  %s21 = inlined_call_operand.vmem [shape: f32[32,29], index: 21, kind: input, shape index: {}]
  %s22 = inlined_call_operand.vmem [shape: f32[1,29], index: 22, kind: input, shape index: {}]
  %s23 = inlined_call_operand.vmem [shape: f32[1,29], index: 23, kind: input, shape index: {}]
  %s24 = inlined_call_operand.vmem [shape: f32[1,29], index: 24, kind: input, shape index: {}]
  %s25 = inlined_call_operand.vmem [shape: f32[29,37], index: 25, kind: input, shape index: {}]
  %s26 = inlined_call_operand.vmem [shape: f32[1,37], index: 26, kind: input, shape index: {}]
  %s27 = inlined_call_operand.vmem [shape: f32[8,37], index: 27, kind: output, shape index: {}]
  %s28 = sld [smem:[#allocation0]]
  $region118: #{forward.1} parent=0
    _
  %s30 = ssub.s32 1, %s28
  %s31 = scalar_select 0, %s30, %s28
  // Predicated region
  $region2: #{forward.1} parent=0 // pred_check
    _
  $region3: #{forward.1} parent=0 // pred_check_branch
    %33 = sbr.rel (0) target = $region5
  $region4: #{forward.1} parent=0 // pred_region
    _
  $region5: #{forward.1} parent=0 // pred_fallthru
    _
  // Predicated region
  $region6: #{forward.1} parent=0 // pred_check
    _
  $region7: #{forward.1} parent=0 // pred_check_branch
    %35 = sbr.rel (0) target = $region9
  $region8: #{forward.1} parent=0 // pred_region
    _
  $region9: #{forward.1} parent=0 // pred_fallthru
    _
  // Predicated region
  $region10: #{forward.1} parent=0 // pred_check
    _
  $region11: #{forward.1} parent=0 // pred_check_branch
    %37 = sbr.rel (0) target = $region13
  $region12: #{forward.1} parent=0 // pred_region
    _
  $region13: #{forward.1} parent=0 // pred_fallthru
    _
  // Predicated region
  $region14: #{forward.1} parent=0 // pred_check
    _
  $region15: #{forward.1} parent=0 // pred_check_branch
    %39 = sbr.rel (0) target = $region17
  $region16: #{forward.1} parent=0 // pred_region
    _
  $region17: #{forward.1} parent=0 // pred_fallthru
    _
  // Predicated region
  $region18: #{forward.1} parent=0 // pred_check
    _
  $region19: #{forward.1} parent=0 // pred_check_branch
    %41 = sbr.rel (0) target = $region21
  $region20: #{forward.1} parent=0 // pred_region
    _
  $region21: #{forward.1} parent=0 // pred_fallthru
    _
  // Predicated region
  $region22: #{forward.1} parent=0 // pred_check
    _
  $region23: #{forward.1} parent=0 // pred_check_branch
    %43 = sbr.rel (0) target = $region25
  $region24: #{forward.1} parent=0 // pred_region
    _
  $region25: #{forward.1} parent=0 // pred_fallthru
    _
  // Predicated region
  $region26: #{forward.1} parent=0 // pred_check
    _
  $region27: #{forward.1} parent=0 // pred_check_branch
    %45 = sbr.rel (0) target = $region29
  $region28: #{forward.1} parent=0 // pred_region
    _
  $region29: #{forward.1} parent=0 // pred_fallthru
    _
  // Predicated region
  $region30: #{forward.1} parent=0 // pred_check
    _
  $region31: #{forward.1} parent=0 // pred_check_branch
    %47 = sbr.rel (0) target = $region33
  $region32: #{forward.1} parent=0 // pred_region
    _
  $region33: #{forward.1} parent=0 // pred_fallthru
    _
  // Predicated region
  $region34: #{forward.1} parent=0 // pred_check
    _
  $region35: #{forward.1} parent=0 // pred_check_branch
    %49 = sbr.rel (0) target = $region37
  $region36: #{forward.1} parent=0 // pred_region
    _
  $region37: #{forward.1} parent=0 // pred_fallthru
    _
  // Predicated region
  $region38: #{forward.1} parent=0 // pred_check
    _
  $region39: #{forward.1} parent=0 // pred_check_branch
    %51 = sbr.rel (0) target = $region41
  $region40: #{forward.1} parent=0 // pred_region
    _
  $region41: #{forward.1} parent=0 // pred_fallthru
    _
  // Predicated region
  $region42: #{forward.1} parent=0 // pred_check
    _
  $region43: #{forward.1} parent=0 // pred_check_branch
    %53 = sbr.rel (0) target = $region45
  $region44: #{forward.1} parent=0 // pred_region
    _
  $region45: #{forward.1} parent=0 // pred_fallthru
    _
  // Predicated region
  $region46: #{forward.1} parent=0 // pred_check
    _
  $region47: #{forward.1} parent=0 // pred_check_branch
    %55 = sbr.rel (0) target = $region49
  $region48: #{forward.1} parent=0 // pred_region
    _
  $region49: #{forward.1} parent=0 // pred_fallthru
    _
  // Predicated region
  $region50: #{forward.1} parent=0 // pred_check
    _
  $region51: #{forward.1} parent=0 // pred_check_branch
    %57 = sbr.rel (0) target = $region53
  $region52: #{forward.1} parent=0 // pred_region
    _
  $region53: #{forward.1} parent=0 // pred_fallthru
    _
  // Predicated region
  $region54: #{forward.1} parent=0 // pred_check
    _
  $region55: #{forward.1} parent=0 // pred_check_branch
    %59 = sbr.rel (0) target = $region57
  $region56: #{forward.1} parent=0 // pred_region
    _
  $region57: #{forward.1} parent=0 // pred_fallthru
    _
  // Predicated region
  $region58: #{forward.1} parent=0 // pred_check
    _
  $region59: #{forward.1} parent=0 // pred_check_branch
    %61 = sbr.rel (0) target = $region61
  $region60: #{forward.1} parent=0 // pred_region
    _
  $region61: #{forward.1} parent=0 // pred_fallthru
    _
  // Predicated region
  $region62: #{forward.1} parent=0 // pred_check
    _
  $region63: #{forward.1} parent=0 // pred_check_branch
    %63 = sbr.rel (0) target = $region65
  $region64: #{forward.1} parent=0 // pred_region
    _
  $region65: #{forward.1} parent=0 // pred_fallthru
    _
  // Predicated region
  $region66: #{forward.1} parent=0 // pred_check
    _
  $region67: #{forward.1} parent=0 // pred_check_branch
    %65 = sbr.rel (0) target = $region69
  $region68: #{forward.1} parent=0 // pred_region
    _
  $region69: #{forward.1} parent=0 // pred_fallthru
    _
  // Predicated region
  $region70: #{forward.1} parent=0 // pred_check
    _
  $region71: #{forward.1} parent=0 // pred_check_branch
    %67 = sbr.rel (0) target = $region73
  $region72: #{forward.1} parent=0 // pred_region
    _
  $region73: #{forward.1} parent=0 // pred_fallthru
    _
  // Predicated region
  $region74: #{forward.1} parent=0 // pred_check
    _
  $region75: #{forward.1} parent=0 // pred_check_branch
    %69 = sbr.rel (0) target = $region77
  $region76: #{forward.1} parent=0 // pred_region
    _
  $region77: #{forward.1} parent=0 // pred_fallthru
    _
  // Predicated region
  $region78: #{forward.1} parent=0 // pred_check
    _
  $region79: #{forward.1} parent=0 // pred_check_branch
    %71 = sbr.rel (0) target = $region81
  $region80: #{forward.1} parent=0 // pred_region
    _
  $region81: #{forward.1} parent=0 // pred_fallthru
    _
  // Predicated region
  $region82: #{forward.1} parent=0 // pred_check
    _
  $region83: #{forward.1} parent=0 // pred_check_branch
    %73 = sbr.rel (0) target = $region85
  $region84: #{forward.1} parent=0 // pred_region
    _
  $region85: #{forward.1} parent=0 // pred_fallthru
    _
  // Predicated region
  $region86: #{forward.1} parent=0 // pred_check
    _
  $region87: #{forward.1} parent=0 // pred_check_branch
    %75 = sbr.rel (0) target = $region89
  $region88: #{forward.1} parent=0 // pred_region
    _
  $region89: #{forward.1} parent=0 // pred_fallthru
    _
  // Predicated region
  $region90: #{forward.1} parent=0 // pred_check
    _
  $region91: #{forward.1} parent=0 // pred_check_branch
    %77 = sbr.rel (0) target = $region93
  $region92: #{forward.1} parent=0 // pred_region
    _
  $region93: #{forward.1} parent=0 // pred_fallthru
    _
  // Predicated region
  $region94: #{forward.1} parent=0 // pred_check
    _
  $region95: #{forward.1} parent=0 // pred_check_branch
    %79 = sbr.rel (0) target = $region97
  $region96: #{forward.1} parent=0 // pred_region
    _
  $region97: #{forward.1} parent=0 // pred_fallthru
    _
  // Predicated region
  $region98: #{forward.1} parent=0 // pred_check
    _
  $region99: #{forward.1} parent=0 // pred_check_branch
    %81 = sbr.rel (0) target = $region101
  $region100: #{forward.1} parent=0 // pred_region
    _
  $region101: #{forward.1} parent=0 // pred_fallthru
    _
  // Predicated region
  $region102: #{forward.1} parent=0 // pred_check
    _
  $region103: #{forward.1} parent=0 // pred_check_branch
    %83 = sbr.rel (0) target = $region105
  $region104: #{forward.1} parent=0 // pred_region
    _
  $region105: #{forward.1} parent=0 // pred_fallthru
    _
  // Predicated region
  $region106: #{forward.1} parent=0 // pred_check
    _
  $region107: #{forward.1} parent=0 // pred_check_branch
    %85 = sbr.rel (0) target = $region109
  $region108: #{forward.1} parent=0 // pred_region
    _
  $region109: #{forward.1} parent=0 // pred_fallthru
    _
  %v86 = vld [vmem:[%s0] sm:$0xff]
  %v87 = vld [vmem:[%s1] sm:$0xff]
  %v88 = vld [vmem:[%s1 + $0x8] sm:$0xff]
  %v89 = vld [vmem:[%s1 + $0x10] sm:$0xff]
  %v90 = vld [vmem:[%s1 + $0x18] sm:$0x1f]
  %v91 = vld [vmem:[%s2] sm:$0x1]
  %v92 = vld [vmem:[%s3] sm:$0x1]
  %v93 = vld [vmem:[%s4] sm:$0x1]
  %v95 = vlaneseq
  %v96 = vshrl.u32 %v95, 7
  %v97 = vsub.s32 0, %v96
  %v98 = vrot.slane %v91, %v97
  %vm100 = vcmask 236544
  %v102 = vsel %vm100, %v86, 0
  %vm104 = vcmask 1044480
  %v106 = vsel %vm104, %v90, 0
  %108 = vmatprep.subr.mxu0 0.0
  %109 = vmatpush1.msra.mxu0 0.0
  %110 = vmatprep.subr.mxu0 0.0
  %111 = vmatpush1.msra.mxu0 0.0
  %112 = vmatprep.subr.mxu0 0.0
  %113 = vmatpush1.msra.mxu0 0.0
  %114 = vmatprep.subr.mxu0 0.0
  %115 = vmatpush1.msra.mxu0 0.0
  %116 = vmatprep.subr.mxu0 0.0
  %117 = vmatpush1.msra.mxu0 0.0
  %118 = vmatprep.subr.mxu0 0.0
  %119 = vmatpush1.msra.mxu0 0.0
  %120 = vmatprep.subr.mxu0 0.0
  %121 = vmatpush1.msra.mxu0 0.0
  %122 = vmatprep.subr.mxu0 0.0
  %123 = vmatpush1.msra.mxu0 0.0
  %124 = vmatprep.subr.mxu0 0.0
  %125 = vmatpush1.msra.mxu0 0.0
  %126 = vmatprep.subr.mxu0 0.0
  %127 = vmatpush1.msra.mxu0 0.0
  %128 = vmatprep.subr.mxu0 0.0
  %129 = vmatpush1.msra.mxu0 0.0
  %130 = vmatprep.subr.mxu0 0.0
  %131 = vmatpush1.msra.mxu0 0.0
  %132 = vmatprep.subr.mxu0 0.0
  %133 = vmatpush1.msra.mxu0 %v106
  %134 = vmatprep.subr.mxu0 0.0
  %135 = vmatpush1.msra.mxu0 %v89
  %136 = vmatprep.subr.mxu0 0.0
  %137 = vmatpush1.msra.mxu0 %v88
  %138 = vmatprep.subr.mxu0 0.0
  %139 = vmatpush1.msra.mxu0 %v87
  %140 = vmatprep.subr.mxu0 0.0
  %141 = vmatpush2.msra.mxu0 0.0
  %142 = vmatprep.subr.mxu0 0.0
  %143 = vmatpush2.msra.mxu0 0.0
  %144 = vmatprep.subr.mxu0 0.0
  %145 = vmatpush2.msra.mxu0 0.0
  %146 = vmatprep.subr.mxu0 0.0
  %147 = vmatpush2.msra.mxu0 0.0
  %148 = vmatprep.subr.mxu0 0.0
  %149 = vmatpush2.msra.mxu0 0.0
  %150 = vmatprep.subr.mxu0 0.0
  %151 = vmatpush2.msra.mxu0 0.0
  %152 = vmatprep.subr.mxu0 0.0
  %153 = vmatpush2.msra.mxu0 0.0
  %154 = vmatprep.subr.mxu0 0.0
  %155 = vmatpush2.msra.mxu0 0.0
  %156 = vmatprep.subr.mxu0 0.0
  %157 = vmatpush2.msra.mxu0 0.0
  %158 = vmatprep.subr.mxu0 0.0
  %159 = vmatpush2.msra.mxu0 0.0
  %160 = vmatprep.subr.mxu0 0.0
  %161 = vmatpush2.msra.mxu0 0.0
  %162 = vmatprep.subr.mxu0 0.0
  %163 = vmatpush2.msra.mxu0 0.0
  %164 = vmatprep.subr.mxu0 0.0
  %165 = vmatpush2.msra.mxu0 0.0
  %166 = vmatprep.subr.mxu0 0.0
  %167 = vmatpush2.msra.mxu0 0.0
  %168 = vmatprep.subr.mxu0 0.0
  %169 = vmatpush2.msra.mxu0 0.0
  %170 = vmatprep.subr.mxu0 0.0
  %171 = vmatpush2.msra.mxu0 0.0
  %172 = vmatprep.mubr.f32.mxu0 0.0
  %173 = vmatmul.mubr.f32.gmra.mxu0 %v102
  %v174 = vpop.f32.mrf.mxu0
  %v175 = vadd.f32 %v98, %v174
  %v176 = vpop.f32.mrf.mxu0
  %177 = vdwg.mxu0
  %vm178 = vcmp.gt.f32.partialorder %v175, 0.0
  %v179 = vmul.f32 %v175, 0.01
  %v180 = vsel %vm178, %v175, %v179
  %vm181 = vcmask 261120
  %v182 = vsel %vm181, %v180, 0.0
  %v183 = vrot.slane %v182, 4
  %v184 = vadd.f32 %v182, %v183
  %v185 = vrot.slane %v184, 2
  %v186 = vadd.f32 %v184, %v185
  %v187 = vrot.slane %v186, 1
  %v188 = vadd.f32 %v186, %v187
  %v189 = vrcp.pop 8.0
  %v190 = vmul.f32 %v188, %v189
  %v191 = vsub.f32 %v180, %v190
  %v192 = vmul.f32 %v191, %v191
  %v193 = vsel %vm181, %v192, 0.0
  %v194 = vrot.slane %v193, 4
  %v195 = vadd.f32 %v193, %v194
  %v196 = vrot.slane %v195, 2
  %v197 = vadd.f32 %v195, %v196
  %v198 = vrot.slane %v197, 1
  %v199 = vadd.f32 %v197, %v198
  %v200 = vmul.f32 %v199, %v189
  %v201 = vadd.f32 %v200, 1e-05
  %v202 = vrsqrt.pop %v201
  %v203 = vmul.f32 %v202, %v92
  %v204 = vmul.f32 %v190, %v203
  %v205 = vsub.f32 %v93, %v204
  %v206 = vlaneseq
  %v207 = vshrl.u32 %v206, 7
  %v208 = vsub.s32 0, %v207
  %v209 = vrot.slane %v203, %v208
  %v210 = vmul.f32 %v180, %v209
  %v212 = vlaneseq
  %v213 = vshrl.u32 %v212, 7
  %v214 = vsub.s32 0, %v213
  %v215 = vrot.slane %v205, %v214
  %v217 = vadd.f32 %v210, %v215
  %v218 = vld [vmem:[%s5] sm:$0xff]
  %v219 = vld [vmem:[%s5 + $0x8] sm:$0xff]
  %v220 = vld [vmem:[%s5 + $0x10] sm:$0xff]
  %v221 = vld [vmem:[%s5 + $0x18] sm:$0xff]
  %v222 = vld [vmem:[%s6] sm:$0x1]
  %v223 = vld [vmem:[%s7] sm:$0x1]
  %v224 = vld [vmem:[%s8] sm:$0x1]
  %v226 = vlaneseq
  %v227 = vshrl.u32 %v226, 7
  %v228 = vsub.s32 0, %v227
  %v229 = vrot.slane %v222, %v228
  %v232 = vsel %vm181, %v217, 0
  %234 = vmatprep.subr.mxu0 0.0
  %235 = vmatpush1.msra.mxu0 0.0
  %236 = vmatprep.subr.mxu0 0.0
  %237 = vmatpush1.msra.mxu0 0.0
  %238 = vmatprep.subr.mxu0 0.0
  %239 = vmatpush1.msra.mxu0 0.0
  %240 = vmatprep.subr.mxu0 0.0
  %241 = vmatpush1.msra.mxu0 0.0
  %242 = vmatprep.subr.mxu0 0.0
  %243 = vmatpush1.msra.mxu0 0.0
  %244 = vmatprep.subr.mxu0 0.0
  %245 = vmatpush1.msra.mxu0 0.0
  %246 = vmatprep.subr.mxu0 0.0
  %247 = vmatpush1.msra.mxu0 0.0
  %248 = vmatprep.subr.mxu0 0.0
  %249 = vmatpush1.msra.mxu0 0.0
  %250 = vmatprep.subr.mxu0 0.0
  %251 = vmatpush1.msra.mxu0 0.0
  %252 = vmatprep.subr.mxu0 0.0
  %253 = vmatpush1.msra.mxu0 0.0
  %254 = vmatprep.subr.mxu0 0.0
  %255 = vmatpush1.msra.mxu0 0.0
  %256 = vmatprep.subr.mxu0 0.0
  %257 = vmatpush1.msra.mxu0 0.0
  %258 = vmatprep.subr.mxu0 0.0
  %259 = vmatpush1.msra.mxu0 %v221
  %260 = vmatprep.subr.mxu0 0.0
  %261 = vmatpush1.msra.mxu0 %v220
  %262 = vmatprep.subr.mxu0 0.0
  %263 = vmatpush1.msra.mxu0 %v219
  %264 = vmatprep.subr.mxu0 0.0
  %265 = vmatpush1.msra.mxu0 %v218
  %266 = vmatprep.subr.mxu0 0.0
  %267 = vmatpush2.msra.mxu0 0.0
  %268 = vmatprep.subr.mxu0 0.0
  %269 = vmatpush2.msra.mxu0 0.0
  %270 = vmatprep.subr.mxu0 0.0
  %271 = vmatpush2.msra.mxu0 0.0
  %272 = vmatprep.subr.mxu0 0.0
  %273 = vmatpush2.msra.mxu0 0.0
  %274 = vmatprep.subr.mxu0 0.0
  %275 = vmatpush2.msra.mxu0 0.0
  %276 = vmatprep.subr.mxu0 0.0
  %277 = vmatpush2.msra.mxu0 0.0
  %278 = vmatprep.subr.mxu0 0.0
  %279 = vmatpush2.msra.mxu0 0.0
  %280 = vmatprep.subr.mxu0 0.0
  %281 = vmatpush2.msra.mxu0 0.0
  %282 = vmatprep.subr.mxu0 0.0
  %283 = vmatpush2.msra.mxu0 0.0
  %284 = vmatprep.subr.mxu0 0.0
  %285 = vmatpush2.msra.mxu0 0.0
  %286 = vmatprep.subr.mxu0 0.0
  %287 = vmatpush2.msra.mxu0 0.0
  %288 = vmatprep.subr.mxu0 0.0
  %289 = vmatpush2.msra.mxu0 0.0
  %290 = vmatprep.subr.mxu0 0.0
  %291 = vmatpush2.msra.mxu0 0.0
  %292 = vmatprep.subr.mxu0 0.0
  %293 = vmatpush2.msra.mxu0 0.0
  %294 = vmatprep.subr.mxu0 0.0
  %295 = vmatpush2.msra.mxu0 0.0
  %296 = vmatprep.subr.mxu0 0.0
  %297 = vmatpush2.msra.mxu0 0.0
  %298 = vmatprep.mubr.f32.mxu0 0.0
  %299 = vmatmul.mubr.f32.gmra.mxu0 %v232
  %v300 = vpop.f32.mrf.mxu0
  %v301 = vadd.f32 %v229, %v300
  %v302 = vpop.f32.mrf.mxu0
  %303 = vdwg.mxu0
  %vm304 = vcmp.gt.f32.partialorder %v301, 0.0
  %v305 = vmul.f32 %v301, 0.01
  %v306 = vsel %vm304, %v301, %v305
  %v307 = vsel %vm181, %v306, 0.0
  %v308 = vrot.slane %v307, 4
  %v309 = vadd.f32 %v307, %v308
  %v310 = vrot.slane %v309, 2
  %v311 = vadd.f32 %v309, %v310
  %v312 = vrot.slane %v311, 1
  %v313 = vadd.f32 %v311, %v312
  %v314 = vmul.f32 %v313, %v189
  %v315 = vsub.f32 %v306, %v314
  %v316 = vmul.f32 %v315, %v315
  %v317 = vsel %vm181, %v316, 0.0
  %v318 = vrot.slane %v317, 4
  %v319 = vadd.f32 %v317, %v318
  %v320 = vrot.slane %v319, 2
  %v321 = vadd.f32 %v319, %v320
  %v322 = vrot.slane %v321, 1
  %v323 = vadd.f32 %v321, %v322
  %v324 = vmul.f32 %v323, %v189
  %v325 = vadd.f32 %v324, 1e-05
  %v326 = vrsqrt.pop %v325
  %v327 = vmul.f32 %v326, %v223
  %v328 = vmul.f32 %v314, %v327
  %v329 = vsub.f32 %v224, %v328
  %v330 = vlaneseq
  %v331 = vshrl.u32 %v330, 7
  %v332 = vsub.s32 0, %v331
  %v333 = vrot.slane %v327, %v332
  %v334 = vmul.f32 %v306, %v333
  %v336 = vlaneseq
  %v337 = vshrl.u32 %v336, 7
  %v338 = vsub.s32 0, %v337
  %v339 = vrot.slane %v329, %v338
  %v341 = vadd.f32 %v334, %v339
  %v342 = vld [vmem:[%s9] sm:$0xff]
  %v343 = vld [vmem:[%s9 + $0x8] sm:$0xff]
  %v344 = vld [vmem:[%s9 + $0x10] sm:$0xff]
  %v345 = vld [vmem:[%s9 + $0x18] sm:$0xff]
  %v346 = vld [vmem:[%s10] sm:$0x1]
  %v347 = vld [vmem:[%s11] sm:$0x1]
  %v348 = vld [vmem:[%s12] sm:$0x1]
  %v350 = vlaneseq
  %v351 = vshrl.u32 %v350, 7
  %v352 = vsub.s32 0, %v351
  %v353 = vrot.slane %v346, %v352
  %v356 = vsel %vm181, %v341, 0
  %358 = vmatprep.subr.mxu0 0.0
  %359 = vmatpush1.msra.mxu0 0.0
  %360 = vmatprep.subr.mxu0 0.0
  %361 = vmatpush1.msra.mxu0 0.0
  %362 = vmatprep.subr.mxu0 0.0
  %363 = vmatpush1.msra.mxu0 0.0
  %364 = vmatprep.subr.mxu0 0.0
  %365 = vmatpush1.msra.mxu0 0.0
  %366 = vmatprep.subr.mxu0 0.0
  %367 = vmatpush1.msra.mxu0 0.0
  %368 = vmatprep.subr.mxu0 0.0
  %369 = vmatpush1.msra.mxu0 0.0
  %370 = vmatprep.subr.mxu0 0.0
  %371 = vmatpush1.msra.mxu0 0.0
  %372 = vmatprep.subr.mxu0 0.0
  %373 = vmatpush1.msra.mxu0 0.0
  %374 = vmatprep.subr.mxu0 0.0
  %375 = vmatpush1.msra.mxu0 0.0
  %376 = vmatprep.subr.mxu0 0.0
  %377 = vmatpush1.msra.mxu0 0.0
  %378 = vmatprep.subr.mxu0 0.0
  %379 = vmatpush1.msra.mxu0 0.0
  %380 = vmatprep.subr.mxu0 0.0
  %381 = vmatpush1.msra.mxu0 0.0
  %382 = vmatprep.subr.mxu0 0.0
  %383 = vmatpush1.msra.mxu0 %v345
  %384 = vmatprep.subr.mxu0 0.0
  %385 = vmatpush1.msra.mxu0 %v344
  %386 = vmatprep.subr.mxu0 0.0
  %387 = vmatpush1.msra.mxu0 %v343
  %388 = vmatprep.subr.mxu0 0.0
  %389 = vmatpush1.msra.mxu0 %v342
  %390 = vmatprep.subr.mxu0 0.0
  %391 = vmatpush2.msra.mxu0 0.0
  %392 = vmatprep.subr.mxu0 0.0
  %393 = vmatpush2.msra.mxu0 0.0
  %394 = vmatprep.subr.mxu0 0.0
  %395 = vmatpush2.msra.mxu0 0.0
  %396 = vmatprep.subr.mxu0 0.0
  %397 = vmatpush2.msra.mxu0 0.0
  %398 = vmatprep.subr.mxu0 0.0
  %399 = vmatpush2.msra.mxu0 0.0
  %400 = vmatprep.subr.mxu0 0.0
  %401 = vmatpush2.msra.mxu0 0.0
  %402 = vmatprep.subr.mxu0 0.0
  %403 = vmatpush2.msra.mxu0 0.0
  %404 = vmatprep.subr.mxu0 0.0
  %405 = vmatpush2.msra.mxu0 0.0
  %406 = vmatprep.subr.mxu0 0.0
  %407 = vmatpush2.msra.mxu0 0.0
  %408 = vmatprep.subr.mxu0 0.0
  %409 = vmatpush2.msra.mxu0 0.0
  %410 = vmatprep.subr.mxu0 0.0
  %411 = vmatpush2.msra.mxu0 0.0
  %412 = vmatprep.subr.mxu0 0.0
  %413 = vmatpush2.msra.mxu0 0.0
  %414 = vmatprep.subr.mxu0 0.0
  %415 = vmatpush2.msra.mxu0 0.0
  %416 = vmatprep.subr.mxu0 0.0
  %417 = vmatpush2.msra.mxu0 0.0
  %418 = vmatprep.subr.mxu0 0.0
  %419 = vmatpush2.msra.mxu0 0.0
  %420 = vmatprep.subr.mxu0 0.0
  %421 = vmatpush2.msra.mxu0 0.0
  %422 = vmatprep.mubr.f32.mxu0 0.0
  %423 = vmatmul.mubr.f32.gmra.mxu0 %v356
  %v424 = vpop.f32.mrf.mxu0
  %v425 = vadd.f32 %v353, %v424
  %v426 = vpop.f32.mrf.mxu0
  %427 = vdwg.mxu0
  %vm428 = vcmp.gt.f32.partialorder %v425, 0.0
  %v429 = vmul.f32 %v425, 0.01
  %v430 = vsel %vm428, %v425, %v429
  %vm431 = vcmask 130048
  %v432 = vsel %vm431, %v430, 0.0
  %v433 = vrot.slane %v432, 4
  %v434 = vadd.f32 %v432, %v433
  %v435 = vrot.slane %v434, 2
  %v436 = vadd.f32 %v434, %v435
  %v437 = vrot.slane %v436, 1
  %v438 = vadd.f32 %v436, %v437
  %v439 = vmul.f32 %v438, %v189
  %v440 = vsub.f32 %v430, %v439
  %v441 = vmul.f32 %v440, %v440
  %v442 = vsel %vm431, %v441, 0.0
  %v443 = vrot.slane %v442, 4
  %v444 = vadd.f32 %v442, %v443
  %v445 = vrot.slane %v444, 2
  %v446 = vadd.f32 %v444, %v445
  %v447 = vrot.slane %v446, 1
  %v448 = vadd.f32 %v446, %v447
  %v449 = vmul.f32 %v448, %v189
  %v450 = vadd.f32 %v449, 1e-05
  %v451 = vrsqrt.pop %v450
  %v452 = vmul.f32 %v451, %v347
  %v453 = vmul.f32 %v439, %v452
  %v454 = vsub.f32 %v348, %v453
  %v455 = vlaneseq
  %v456 = vshrl.u32 %v455, 7
  %v457 = vsub.s32 0, %v456
  %v458 = vrot.slane %v452, %v457
  %v459 = vmul.f32 %v430, %v458
  %v461 = vlaneseq
  %v462 = vshrl.u32 %v461, 7
  %v463 = vsub.s32 0, %v462
  %v464 = vrot.slane %v454, %v463
  %v466 = vadd.f32 %v459, %v464
  %v467 = vld [vmem:[%s13] sm:$0xff]
  %v468 = vld [vmem:[%s13 + $0x8] sm:$0xff]
  %v469 = vld [vmem:[%s14] sm:$0x1]
  %v470 = vld [vmem:[%s15] sm:$0x1]
  %v471 = vld [vmem:[%s16] sm:$0x1]
  %v473 = vlaneseq
  %v474 = vshrl.u32 %v473, 7
  %v475 = vsub.s32 0, %v474
  %v476 = vrot.slane %v469, %v475
  %v479 = vsel %vm431, %v466, 0
  %481 = vmatprep.subr.mxu0 0.0
  %482 = vmatpush1.msra.mxu0 0.0
  %483 = vmatprep.subr.mxu0 0.0
  %484 = vmatpush1.msra.mxu0 0.0
  %485 = vmatprep.subr.mxu0 0.0
  %486 = vmatpush1.msra.mxu0 0.0
  %487 = vmatprep.subr.mxu0 0.0
  %488 = vmatpush1.msra.mxu0 0.0
  %489 = vmatprep.subr.mxu0 0.0
  %490 = vmatpush1.msra.mxu0 0.0
  %491 = vmatprep.subr.mxu0 0.0
  %492 = vmatpush1.msra.mxu0 0.0
  %493 = vmatprep.subr.mxu0 0.0
  %494 = vmatpush1.msra.mxu0 0.0
  %495 = vmatprep.subr.mxu0 0.0
  %496 = vmatpush1.msra.mxu0 0.0
  %497 = vmatprep.subr.mxu0 0.0
  %498 = vmatpush1.msra.mxu0 0.0
  %499 = vmatprep.subr.mxu0 0.0
  %500 = vmatpush1.msra.mxu0 0.0
  %501 = vmatprep.subr.mxu0 0.0
  %502 = vmatpush1.msra.mxu0 0.0
  %503 = vmatprep.subr.mxu0 0.0
  %504 = vmatpush1.msra.mxu0 0.0
  %505 = vmatprep.subr.mxu0 0.0
  %506 = vmatpush1.msra.mxu0 0.0
  %507 = vmatprep.subr.mxu0 0.0
  %508 = vmatpush1.msra.mxu0 0.0
  %509 = vmatprep.subr.mxu0 0.0
  %510 = vmatpush1.msra.mxu0 %v468
  %511 = vmatprep.subr.mxu0 0.0
  %512 = vmatpush1.msra.mxu0 %v467
  %513 = vmatprep.subr.mxu0 0.0
  %514 = vmatpush2.msra.mxu0 0.0
  %515 = vmatprep.subr.mxu0 0.0
  %516 = vmatpush2.msra.mxu0 0.0
  %517 = vmatprep.subr.mxu0 0.0
  %518 = vmatpush2.msra.mxu0 0.0
  %519 = vmatprep.subr.mxu0 0.0
  %520 = vmatpush2.msra.mxu0 0.0
  %521 = vmatprep.subr.mxu0 0.0
  %522 = vmatpush2.msra.mxu0 0.0
  %523 = vmatprep.subr.mxu0 0.0
  %524 = vmatpush2.msra.mxu0 0.0
  %525 = vmatprep.subr.mxu0 0.0
  %526 = vmatpush2.msra.mxu0 0.0
  %527 = vmatprep.subr.mxu0 0.0
  %528 = vmatpush2.msra.mxu0 0.0
  %529 = vmatprep.subr.mxu0 0.0
  %530 = vmatpush2.msra.mxu0 0.0
  %531 = vmatprep.subr.mxu0 0.0
  %532 = vmatpush2.msra.mxu0 0.0
  %533 = vmatprep.subr.mxu0 0.0
  %534 = vmatpush2.msra.mxu0 0.0
  %535 = vmatprep.subr.mxu0 0.0
  %536 = vmatpush2.msra.mxu0 0.0
  %537 = vmatprep.subr.mxu0 0.0
  %538 = vmatpush2.msra.mxu0 0.0
  %539 = vmatprep.subr.mxu0 0.0
  %540 = vmatpush2.msra.mxu0 0.0
  %541 = vmatprep.subr.mxu0 0.0
  %542 = vmatpush2.msra.mxu0 0.0
  %543 = vmatprep.subr.mxu0 0.0
  %544 = vmatpush2.msra.mxu0 0.0
  %545 = vmatprep.mubr.f32.mxu0 0.0
  %546 = vmatmul.mubr.f32.gmra.mxu0 %v479
  %v547 = vpop.f32.mrf.mxu0
  %v548 = vadd.f32 %v476, %v547
  %v549 = vpop.f32.mrf.mxu0
  %550 = vdwg.mxu0
  %vm551 = vcmp.gt.f32.partialorder %v548, 0.0
  %v552 = vmul.f32 %v548, 0.01
  %v553 = vsel %vm551, %v548, %v552
  %v554 = vsel %vm181, %v553, 0.0
  %v555 = vrot.slane %v554, 4
  %v556 = vadd.f32 %v554, %v555
  %v557 = vrot.slane %v556, 2
  %v558 = vadd.f32 %v556, %v557
  %v559 = vrot.slane %v558, 1
  %v560 = vadd.f32 %v558, %v559
  %v561 = vmul.f32 %v560, %v189
  %v562 = vsub.f32 %v553, %v561
  %v563 = vmul.f32 %v562, %v562
  %v564 = vsel %vm181, %v563, 0.0
  %v565 = vrot.slane %v564, 4
  %v566 = vadd.f32 %v564, %v565
  %v567 = vrot.slane %v566, 2
  %v568 = vadd.f32 %v566, %v567
  %v569 = vrot.slane %v568, 1
  %v570 = vadd.f32 %v568, %v569
  %v571 = vmul.f32 %v570, %v189
  %v572 = vadd.f32 %v571, 1e-05
  %v573 = vrsqrt.pop %v572
  %v574 = vmul.f32 %v573, %v470
  %v575 = vmul.f32 %v561, %v574
  %v576 = vsub.f32 %v471, %v575
  %v577 = vlaneseq
  %v578 = vshrl.u32 %v577, 7
  %v579 = vsub.s32 0, %v578
  %v580 = vrot.slane %v574, %v579
  %v581 = vmul.f32 %v553, %v580
  %v583 = vlaneseq
  %v584 = vshrl.u32 %v583, 7
  %v585 = vsub.s32 0, %v584
  %v586 = vrot.slane %v576, %v585
  %v588 = vadd.f32 %v581, %v586
  %v589 = vld [vmem:[%s17] sm:$0xff]
  %v590 = vld [vmem:[%s17 + $0x8] sm:$0xff]
  %v591 = vld [vmem:[%s17 + $0x10] sm:$0xff]
  %v592 = vld [vmem:[%s17 + $0x18] sm:$0xff]
  %v593 = vld [vmem:[%s18] sm:$0x1]
  %v594 = vld [vmem:[%s19] sm:$0x1]
  %v595 = vld [vmem:[%s20] sm:$0x1]
  %v597 = vlaneseq
  %v598 = vshrl.u32 %v597, 7
  %v599 = vsub.s32 0, %v598
  %v600 = vrot.slane %v593, %v599
  %v603 = vsel %vm181, %v588, 0
  %605 = vmatprep.subr.mxu0 0.0
  %606 = vmatpush1.msra.mxu0 0.0
  %607 = vmatprep.subr.mxu0 0.0
  %608 = vmatpush1.msra.mxu0 0.0
  %609 = vmatprep.subr.mxu0 0.0
  %610 = vmatpush1.msra.mxu0 0.0
  %611 = vmatprep.subr.mxu0 0.0
  %612 = vmatpush1.msra.mxu0 0.0
  %613 = vmatprep.subr.mxu0 0.0
  %614 = vmatpush1.msra.mxu0 0.0
  %615 = vmatprep.subr.mxu0 0.0
  %616 = vmatpush1.msra.mxu0 0.0
  %617 = vmatprep.subr.mxu0 0.0
  %618 = vmatpush1.msra.mxu0 0.0
  %619 = vmatprep.subr.mxu0 0.0
  %620 = vmatpush1.msra.mxu0 0.0
  %621 = vmatprep.subr.mxu0 0.0
  %622 = vmatpush1.msra.mxu0 0.0
  %623 = vmatprep.subr.mxu0 0.0
  %624 = vmatpush1.msra.mxu0 0.0
  %625 = vmatprep.subr.mxu0 0.0
  %626 = vmatpush1.msra.mxu0 0.0
  %627 = vmatprep.subr.mxu0 0.0
  %628 = vmatpush1.msra.mxu0 0.0
  %629 = vmatprep.subr.mxu0 0.0
  %630 = vmatpush1.msra.mxu0 %v592
  %631 = vmatprep.subr.mxu0 0.0
  %632 = vmatpush1.msra.mxu0 %v591
  %633 = vmatprep.subr.mxu0 0.0
  %634 = vmatpush1.msra.mxu0 %v590
  %635 = vmatprep.subr.mxu0 0.0
  %636 = vmatpush1.msra.mxu0 %v589
  %637 = vmatprep.subr.mxu0 0.0
  %638 = vmatpush2.msra.mxu0 0.0
  %639 = vmatprep.subr.mxu0 0.0
  %640 = vmatpush2.msra.mxu0 0.0
  %641 = vmatprep.subr.mxu0 0.0
  %642 = vmatpush2.msra.mxu0 0.0
  %643 = vmatprep.subr.mxu0 0.0
  %644 = vmatpush2.msra.mxu0 0.0
  %645 = vmatprep.subr.mxu0 0.0
  %646 = vmatpush2.msra.mxu0 0.0
  %647 = vmatprep.subr.mxu0 0.0
  %648 = vmatpush2.msra.mxu0 0.0
  %649 = vmatprep.subr.mxu0 0.0
  %650 = vmatpush2.msra.mxu0 0.0
  %651 = vmatprep.subr.mxu0 0.0
  %652 = vmatpush2.msra.mxu0 0.0
  %653 = vmatprep.subr.mxu0 0.0
  %654 = vmatpush2.msra.mxu0 0.0
  %655 = vmatprep.subr.mxu0 0.0
  %656 = vmatpush2.msra.mxu0 0.0
  %657 = vmatprep.subr.mxu0 0.0
  %658 = vmatpush2.msra.mxu0 0.0
  %659 = vmatprep.subr.mxu0 0.0
  %660 = vmatpush2.msra.mxu0 0.0
  %661 = vmatprep.subr.mxu0 0.0
  %662 = vmatpush2.msra.mxu0 0.0
  %663 = vmatprep.subr.mxu0 0.0
  %664 = vmatpush2.msra.mxu0 0.0
  %665 = vmatprep.subr.mxu0 0.0
  %666 = vmatpush2.msra.mxu0 0.0
  %667 = vmatprep.subr.mxu0 0.0
  %668 = vmatpush2.msra.mxu0 0.0
  %669 = vmatprep.mubr.f32.mxu0 0.0
  %670 = vmatmul.mubr.f32.gmra.mxu0 %v603
  %v671 = vpop.f32.mrf.mxu0
  %v672 = vadd.f32 %v600, %v671
  %v673 = vpop.f32.mrf.mxu0
  %674 = vdwg.mxu0
  %vm675 = vcmp.gt.f32.partialorder %v672, 0.0
  %v676 = vmul.f32 %v672, 0.01
  %v677 = vsel %vm675, %v672, %v676
  %v678 = vsel %vm181, %v677, 0.0
  %v679 = vrot.slane %v678, 4
  %v680 = vadd.f32 %v678, %v679
  %v681 = vrot.slane %v680, 2
  %v682 = vadd.f32 %v680, %v681
  %v683 = vrot.slane %v682, 1
  %v684 = vadd.f32 %v682, %v683
  %v685 = vmul.f32 %v684, %v189
  %v686 = vsub.f32 %v677, %v685
  %v687 = vmul.f32 %v686, %v686
  %v688 = vsel %vm181, %v687, 0.0
  %v689 = vrot.slane %v688, 4
  %v690 = vadd.f32 %v688, %v689
  %v691 = vrot.slane %v690, 2
  %v692 = vadd.f32 %v690, %v691
  %v693 = vrot.slane %v692, 1
  %v694 = vadd.f32 %v692, %v693
  %v695 = vmul.f32 %v694, %v189
  %v696 = vadd.f32 %v695, 1e-05
  %v697 = vrsqrt.pop %v696
  %v698 = vmul.f32 %v697, %v594
  %v699 = vmul.f32 %v685, %v698
  %v700 = vsub.f32 %v595, %v699
  %v701 = vlaneseq
  %v702 = vshrl.u32 %v701, 7
  %v703 = vsub.s32 0, %v702
  %v704 = vrot.slane %v698, %v703
  %v705 = vmul.f32 %v677, %v704
  %v707 = vlaneseq
  %v708 = vshrl.u32 %v707, 7
  %v709 = vsub.s32 0, %v708
  %v710 = vrot.slane %v700, %v709
  %v712 = vadd.f32 %v705, %v710
  %v713 = vld [vmem:[%s21] sm:$0xff]
  %v714 = vld [vmem:[%s21 + $0x8] sm:$0xff]
  %v715 = vld [vmem:[%s21 + $0x10] sm:$0xff]
  %v716 = vld [vmem:[%s21 + $0x18] sm:$0xff]
  %v717 = vld [vmem:[%s22] sm:$0x1]
  %v718 = vld [vmem:[%s23] sm:$0x1]
  %v719 = vld [vmem:[%s24] sm:$0x1]
  %v721 = vlaneseq
  %v722 = vshrl.u32 %v721, 7
  %v723 = vsub.s32 0, %v722
  %v724 = vrot.slane %v717, %v723
  %v727 = vsel %vm181, %v712, 0
  %729 = vmatprep.subr.mxu0 0.0
  %730 = vmatpush1.msra.mxu0 0.0
  %731 = vmatprep.subr.mxu0 0.0
  %732 = vmatpush1.msra.mxu0 0.0
  %733 = vmatprep.subr.mxu0 0.0
  %734 = vmatpush1.msra.mxu0 0.0
  %735 = vmatprep.subr.mxu0 0.0
  %736 = vmatpush1.msra.mxu0 0.0
  %737 = vmatprep.subr.mxu0 0.0
  %738 = vmatpush1.msra.mxu0 0.0
  %739 = vmatprep.subr.mxu0 0.0
  %740 = vmatpush1.msra.mxu0 0.0
  %741 = vmatprep.subr.mxu0 0.0
  %742 = vmatpush1.msra.mxu0 0.0
  %743 = vmatprep.subr.mxu0 0.0
  %744 = vmatpush1.msra.mxu0 0.0
  %745 = vmatprep.subr.mxu0 0.0
  %746 = vmatpush1.msra.mxu0 0.0
  %747 = vmatprep.subr.mxu0 0.0
  %748 = vmatpush1.msra.mxu0 0.0
  %749 = vmatprep.subr.mxu0 0.0
  %750 = vmatpush1.msra.mxu0 0.0
  %751 = vmatprep.subr.mxu0 0.0
  %752 = vmatpush1.msra.mxu0 0.0
  %753 = vmatprep.subr.mxu0 0.0
  %754 = vmatpush1.msra.mxu0 %v716
  %755 = vmatprep.subr.mxu0 0.0
  %756 = vmatpush1.msra.mxu0 %v715
  %757 = vmatprep.subr.mxu0 0.0
  %758 = vmatpush1.msra.mxu0 %v714
  %759 = vmatprep.subr.mxu0 0.0
  %760 = vmatpush1.msra.mxu0 %v713
  %761 = vmatprep.subr.mxu0 0.0
  %762 = vmatpush2.msra.mxu0 0.0
  %763 = vmatprep.subr.mxu0 0.0
  %764 = vmatpush2.msra.mxu0 0.0
  %765 = vmatprep.subr.mxu0 0.0
  %766 = vmatpush2.msra.mxu0 0.0
  %767 = vmatprep.subr.mxu0 0.0
  %768 = vmatpush2.msra.mxu0 0.0
  %769 = vmatprep.subr.mxu0 0.0
  %770 = vmatpush2.msra.mxu0 0.0
  %771 = vmatprep.subr.mxu0 0.0
  %772 = vmatpush2.msra.mxu0 0.0
  %773 = vmatprep.subr.mxu0 0.0
  %774 = vmatpush2.msra.mxu0 0.0
  %775 = vmatprep.subr.mxu0 0.0
  %776 = vmatpush2.msra.mxu0 0.0
  %777 = vmatprep.subr.mxu0 0.0
  %778 = vmatpush2.msra.mxu0 0.0
  %779 = vmatprep.subr.mxu0 0.0
  %780 = vmatpush2.msra.mxu0 0.0
  %781 = vmatprep.subr.mxu0 0.0
  %782 = vmatpush2.msra.mxu0 0.0
  %783 = vmatprep.subr.mxu0 0.0
  %784 = vmatpush2.msra.mxu0 0.0
  %785 = vmatprep.subr.mxu0 0.0
  %786 = vmatpush2.msra.mxu0 0.0
  %787 = vmatprep.subr.mxu0 0.0
  %788 = vmatpush2.msra.mxu0 0.0
  %789 = vmatprep.subr.mxu0 0.0
  %790 = vmatpush2.msra.mxu0 0.0
  %791 = vmatprep.subr.mxu0 0.0
  %792 = vmatpush2.msra.mxu0 0.0
  %793 = vmatprep.mubr.f32.mxu0 0.0
  %794 = vmatmul.mubr.f32.gmra.mxu0 %v727
  %v795 = vpop.f32.mrf.mxu0
  %v796 = vadd.f32 %v724, %v795
  %v797 = vpop.f32.mrf.mxu0
  %798 = vdwg.mxu0
  %vm799 = vcmp.gt.f32.partialorder %v796, 0.0
  %v800 = vmul.f32 %v796, 0.01
  %v801 = vsel %vm799, %v796, %v800
  %v802 = vsel %vm100, %v801, 0.0
  %v803 = vrot.slane %v802, 4
  %v804 = vadd.f32 %v802, %v803
  %v805 = vrot.slane %v804, 2
  %v806 = vadd.f32 %v804, %v805
  %v807 = vrot.slane %v806, 1
  %v808 = vadd.f32 %v806, %v807
  %v809 = vmul.f32 %v808, %v189
  %v810 = vsub.f32 %v801, %v809
  %v811 = vmul.f32 %v810, %v810
  %v812 = vsel %vm100, %v811, 0.0
  %v813 = vrot.slane %v812, 4
  %v814 = vadd.f32 %v812, %v813
  %v815 = vrot.slane %v814, 2
  %v816 = vadd.f32 %v814, %v815
  %v817 = vrot.slane %v816, 1
  %v818 = vadd.f32 %v816, %v817
  %v819 = vmul.f32 %v818, %v189
  %v820 = vadd.f32 %v819, 1e-05
  %v821 = vrsqrt.pop %v820
  %v822 = vmul.f32 %v821, %v718
  %v823 = vmul.f32 %v809, %v822
  %v824 = vsub.f32 %v719, %v823
  %v825 = vlaneseq
  %v826 = vshrl.u32 %v825, 7
  %v827 = vsub.s32 0, %v826
  %v828 = vrot.slane %v822, %v827
  %v829 = vmul.f32 %v801, %v828
  %v831 = vlaneseq
  %v832 = vshrl.u32 %v831, 7
  %v833 = vsub.s32 0, %v832
  %v834 = vrot.slane %v824, %v833
  %v836 = vadd.f32 %v829, %v834
  %v837 = vld [vmem:[%s25] sm:$0xff]
  %v838 = vld [vmem:[%s25 + $0x8] sm:$0xff]
  %v839 = vld [vmem:[%s25 + $0x10] sm:$0xff]
  %v840 = vld [vmem:[%s25 + $0x18] sm:$0x1f]
  %v841 = vld [vmem:[%s26] sm:$0x1]
  %v843 = vlaneseq
  %v844 = vshrl.u32 %v843, 7
  %v845 = vsub.s32 0, %v844
  %v846 = vrot.slane %v841, %v845
  %v849 = vsel %vm100, %v836, 0
  %v852 = vsel %vm104, %v840, 0
  %854 = vmatprep.subr.mxu0 0.0
  %855 = vmatpush1.msra.mxu0 0.0
  %856 = vmatprep.subr.mxu0 0.0
  %857 = vmatpush1.msra.mxu0 0.0
  %858 = vmatprep.subr.mxu0 0.0
  %859 = vmatpush1.msra.mxu0 0.0
  %860 = vmatprep.subr.mxu0 0.0
  %861 = vmatpush1.msra.mxu0 0.0
  %862 = vmatprep.subr.mxu0 0.0
  %863 = vmatpush1.msra.mxu0 0.0
  %864 = vmatprep.subr.mxu0 0.0
  %865 = vmatpush1.msra.mxu0 0.0
  %866 = vmatprep.subr.mxu0 0.0
  %867 = vmatpush1.msra.mxu0 0.0
  %868 = vmatprep.subr.mxu0 0.0
  %869 = vmatpush1.msra.mxu0 0.0
  %870 = vmatprep.subr.mxu0 0.0
  %871 = vmatpush1.msra.mxu0 0.0
  %872 = vmatprep.subr.mxu0 0.0
  %873 = vmatpush1.msra.mxu0 0.0
  %874 = vmatprep.subr.mxu0 0.0
  %875 = vmatpush1.msra.mxu0 0.0
  %876 = vmatprep.subr.mxu0 0.0
  %877 = vmatpush1.msra.mxu0 0.0
  %878 = vmatprep.subr.mxu0 0.0
  %879 = vmatpush1.msra.mxu0 %v852
  %880 = vmatprep.subr.mxu0 0.0
  %881 = vmatpush1.msra.mxu0 %v839
  %882 = vmatprep.subr.mxu0 0.0
  %883 = vmatpush1.msra.mxu0 %v838
  %884 = vmatprep.subr.mxu0 0.0
  %885 = vmatpush1.msra.mxu0 %v837
  %886 = vmatprep.subr.mxu0 0.0
  %887 = vmatpush2.msra.mxu0 0.0
  %888 = vmatprep.subr.mxu0 0.0
  %889 = vmatpush2.msra.mxu0 0.0
  %890 = vmatprep.subr.mxu0 0.0
  %891 = vmatpush2.msra.mxu0 0.0
  %892 = vmatprep.subr.mxu0 0.0
  %893 = vmatpush2.msra.mxu0 0.0
  %894 = vmatprep.subr.mxu0 0.0
  %895 = vmatpush2.msra.mxu0 0.0
  %896 = vmatprep.subr.mxu0 0.0
  %897 = vmatpush2.msra.mxu0 0.0
  %898 = vmatprep.subr.mxu0 0.0
  %899 = vmatpush2.msra.mxu0 0.0
  %900 = vmatprep.subr.mxu0 0.0
  %901 = vmatpush2.msra.mxu0 0.0
  %902 = vmatprep.subr.mxu0 0.0
  %903 = vmatpush2.msra.mxu0 0.0
  %904 = vmatprep.subr.mxu0 0.0
  %905 = vmatpush2.msra.mxu0 0.0
  %906 = vmatprep.subr.mxu0 0.0
  %907 = vmatpush2.msra.mxu0 0.0
  %908 = vmatprep.subr.mxu0 0.0
  %909 = vmatpush2.msra.mxu0 0.0
  %910 = vmatprep.subr.mxu0 0.0
  %911 = vmatpush2.msra.mxu0 0.0
  %912 = vmatprep.subr.mxu0 0.0
  %913 = vmatpush2.msra.mxu0 0.0
  %914 = vmatprep.subr.mxu0 0.0
  %915 = vmatpush2.msra.mxu0 0.0
  %916 = vmatprep.subr.mxu0 0.0
  %917 = vmatpush2.msra.mxu0 0.0
  %918 = vmatprep.mubr.f32.mxu0 0.0
  %919 = vmatmul.mubr.f32.gmra.mxu0 %v849
  %v920 = vpop.f32.mrf.mxu0
  %v921 = vadd.f32 %v846, %v920
  %v922 = vpop.f32.mrf.mxu0
  %923 = vdwg.mxu0
  %vm924 = vcmask 302080
  %925 = vst.msk [vmem:[%s27] sm:$0xff] %vm924, %v921
  // Predicated region
  $region110: #{forward.1} parent=0 // pred_check
    _
  $region111: #{forward.1} parent=0 // pred_check_branch
    %927 = sbr.rel (0) target = $region113
  $region112: #{forward.1} parent=0 // pred_region
    _
  $region113: #{forward.1} parent=0 // pred_fallthru
    _
  // Predicated region
  $region114: #{forward.1} parent=0 // pred_check
    _
  $region115: #{forward.1} parent=0 // pred_check_branch
    %929 = sbr.rel (0) target = $region117
  $region116: #{forward.1} parent=0 // pred_region
    _
  $region117: #{forward.1} parent=0 // pred_fallthru
    _

</llo_original>
